<compile_context>
chip_gen: v5e
topology: v5e:2x2
jax: 0.10.0
libtpu: 0.0.40
codegen_flags: <defaults>
</compile_context>

<pallas_src>
import jax
import jax.numpy as jnp
from jax.experimental import pallas as pl
from jax.experimental.pallas import tpu as pltpu

EPS = 1e-5
NEG_SLOPE = 0.01   # nn.LeakyReLU default


def _round_up(x, m):
    return (x + m - 1) // m * m


# --------------------------- Pallas kernel -----------------------------------

def _make_kernel(*, ni_eq_nf, n_valid, nl_p, need_mask):
    """n_valid = N*L (valid lane positions), nl_p = padded lane count."""
    inv_n = 1.0 / float(n_valid)

    def body(x_ref, m_ref, w1_ref, w2_ref, wsc_ref, pv_ref, o_ref):
        xv = x_ref[...]                    # (ni_p, NL_p) f32, lane-dense

        # Hoisted boundary / validity masks, shared by both convs.
        at_start = m_ref[0:1, :] > 0.0     # pos-in-sample == 0
        at_end = m_ref[1:2, :] > 0.0       # pos-in-sample == L-1
        valid = m_ref[2:3, :]              # 1.0 on real N*L lanes, 0.0 on pads

        def lrelu(z):
            return jnp.maximum(z, NEG_SLOPE * z)

        def conv3(h, w_ref):
            # Reflect-'same' k=3 conv as three accumulated matmuls (no concat).
            # Shifts via XLU roll (non-negative shifts only); per-sample reflect
            # boundaries fixed with one vsel per side.
            hm1 = pltpu.roll(h, 1, axis=1)          # h[i-1] (circular)
            hp1 = pltpu.roll(h, nl_p - 1, axis=1)   # h[i+1] (circular)
            left = jnp.where(at_start, hp1, hm1)    # reflect at sample start
            right = jnp.where(at_end, hm1, hp1)     # reflect at sample end
            y = jnp.dot(w_ref[1], h, preferred_element_type=jnp.float32)
            y = y + jnp.dot(w_ref[0], left, preferred_element_type=jnp.float32)
            y = y + jnp.dot(w_ref[2], right, preferred_element_type=jnp.float32)
            return y

        def bn(y, gamma, beta, mask_input):
            # Training-mode batch stats (biased var) over the valid (N, L)
            # positions, single pass: var = E[y^2] - mean^2 (clamped >= 0),
            # fused normalize + affine: y*a + (beta - a*mean).
            if need_mask and mask_input:
                y = y * valid              # zero pad lanes once; drops from sums
            mean = jnp.sum(y, axis=1, keepdims=True) * inv_n
            ex2 = jnp.sum(y * y, axis=1, keepdims=True) * inv_n
            var = jnp.maximum(ex2 - mean * mean, 0.0)
            a = gamma * jax.lax.rsqrt(var + EPS)
            return y * a + (beta - a * mean)

        g1, be1 = pv_ref[:, 0:1], pv_ref[:, 1:2]
        g2, be2 = pv_ref[:, 2:3], pv_ref[:, 3:4]

        # convblock1 / convblock2 (conv bias absorbed exactly by training-mode BN)
        h = lrelu(bn(conv3(xv, w1_ref), g1, be1, True))
        h = lrelu(bn(conv3(h, w2_ref), g2, be2, True))

        # shortcut
        if ni_eq_nf:
            # input pad lanes are exact zeros -> sums already correct, skip mask pass
            sc = bn(xv, pv_ref[:, 4:5], pv_ref[:, 5:6], False)
        else:
            sc = jnp.dot(wsc_ref[...], xv, preferred_element_type=jnp.float32)
            sc = sc + pv_ref[:, 5:6]

        o_ref[...] = lrelu(h + sc)

    if ni_eq_nf:
        def kernel(x_ref, m_ref, w1_ref, w2_ref, pv_ref, o_ref):
            body(x_ref, m_ref, w1_ref, w2_ref, None, pv_ref, o_ref)
    else:
        def kernel(x_ref, m_ref, w1_ref, w2_ref, wsc_ref, pv_ref, o_ref):
            body(x_ref, m_ref, w1_ref, w2_ref, wsc_ref, pv_ref, o_ref)
    return kernel


# --------------------------- wrapper ------------------------------------------

def _pack_conv_weight_taps(w, cin_p, cout_p):
    # w: (Cout, Cin, 3) -> (3, cout_p, cin_p); tap k multiplies x[i + (k-1)].
    cout, cin, _ = w.shape
    wt = jnp.transpose(w, (2, 0, 1)).astype(jnp.float32)        # (3, Cout, Cin)
    return jnp.pad(wt, ((0, 0), (0, cout_p - cout), (0, cin_p - cin)))


def _vmem_limit_bytes(est_bytes):
    # Per-generation cap: ~40 MiB on 64 MiB-VMEM parts (v7x), up to ~96 MiB on
    # 128 MiB parts (v5e/v6e). Falls back conservatively if no TPU is queryable.
    try:
        cap = int(pltpu.get_tpu_info().vmem_capacity_bytes)
    except Exception:
        cap = 64 << 20
    hard = max(16 << 20, min(cap - (24 << 20), (cap * 3) // 4))
    return int(max(16 << 20, min(hard, 2 * est_bytes)))


def res_block_two_conv(x, params):
    """x: (N, ni, L) float32 (PyTorch NCL layout). Returns (N, nf, L) float32."""
    N, ni, L = x.shape
    if L < 2:
        raise ValueError("reflect 'same' padding with kernel size 3 requires L >= 2")
    nf = params["w1"].shape[0]
    ni_eq_nf = (ni == nf)

    ni_p = _round_up(ni, 8)
    nf_p = _round_up(nf, 8)
    nl = N * L
    nl_p = _round_up(nl, 128)
    need_mask = nl_p != nl

    # Lane-dense activation layout: (C, N*L) padded to (C_p, NL_p) with zeros.
    x2 = jnp.transpose(x, (1, 0, 2)).reshape(ni, nl).astype(jnp.float32)
    x2 = jnp.pad(x2, ((0, ni_p - ni), (0, nl_p - nl)))

    # Boundary / validity masks on the lane axis (one tiny operand).
    lane = jnp.arange(nl_p, dtype=jnp.int32)
    pos = lane % L
    masks = jnp.stack([(pos == 0).astype(jnp.float32),
                       (pos == L - 1).astype(jnp.float32),
                       (lane < nl).astype(jnp.float32)], axis=0)   # (3, NL_p)

    w1_t = _pack_conv_weight_taps(params["w1"], ni_p, nf_p)        # (3, nf_p, ni_p)
    w2_t = _pack_conv_weight_taps(params["w2"], nf_p, nf_p)        # (3, nf_p, nf_p)

    if ni_eq_nf:
        sc_a = params["g_sc"][0]
        sc_b = params["b_sc_bn"][0]
    else:
        sc_a = jnp.zeros((nf,), jnp.float32)
        sc_b = params["b_sc"][0]
    # packed per-channel params: [gamma1, beta1, gamma2, beta2, sc_a, sc_b]
    pvec = jnp.stack([params["g1"][0], params["be1"][0],
                      params["g2"][0], params["be2"][0],
                      sc_a, sc_b], axis=1).astype(jnp.float32)     # (nf, 6)
    pvec = jnp.pad(pvec, ((0, nf_p - nf), (0, 0)))

    operands = [x2, masks, w1_t, w2_t]
    if not ni_eq_nf:
        wsc = params["w_sc"][:, :, 0].astype(jnp.float32)
        operands.append(jnp.pad(wsc, ((0, nf_p - nf), (0, ni_p - ni))))
    operands.append(pvec)

    vmem = pl.BlockSpec(memory_space=pltpu.MemorySpace.VMEM)
    # live set: x + conv temps (4 shift buffers) + conv out + h + sc + out (+ masks)
    est_bytes = 4 * nl_p * (2 * ni_p + 10 * nf_p + 8)

    out_p = pl.pallas_call(
        _make_kernel(ni_eq_nf=ni_eq_nf, n_valid=nl, nl_p=nl_p, need_mask=need_mask),
        out_shape=jax.ShapeDtypeStruct((nf_p, nl_p), jnp.float32),
        in_specs=[vmem] * len(operands),
        out_specs=vmem,
        compiler_params=pltpu.CompilerParams(
            vmem_limit_bytes=_vmem_limit_bytes(est_bytes)),
    )(*operands)

    out = out_p[:nf, :nl].reshape(nf, N, L)
    return jnp.transpose(out, (1, 0, 2))


# --------------------------- params & pure-JAX reference ----------------------

def init_params(key, ni, nf):
    ks = jax.random.split(key, 10)

    def u(k, shape, fan_in):
        bound = 1.0 / jnp.sqrt(fan_in)
        return jax.random.uniform(k, shape, jnp.float32, -bound, bound)

    p = {
        "w1": u(ks[0], (nf, ni, 3), ni * 3),
        "b1": u(ks[1], (1, nf), ni * 3),
        "g1": 1.0 + 0.1 * jax.random.normal(ks[2], (1, nf), jnp.float32),
        "be1": 0.1 * jax.random.normal(ks[3], (1, nf), jnp.float32),
        "w2": u(ks[4], (nf, nf, 3), nf * 3),
        "b2": u(ks[5], (1, nf), nf * 3),
        "g2": 1.0 + 0.1 * jax.random.normal(ks[6], (1, nf), jnp.float32),
        "be2": 0.1 * jax.random.normal(ks[7], (1, nf), jnp.float32),
    }
    if ni == nf:
        p["g_sc"] = 1.0 + 0.1 * jax.random.normal(ks[8], (1, nf), jnp.float32)
        p["b_sc_bn"] = 0.1 * jax.random.normal(ks[9], (1, nf), jnp.float32)
    else:
        p["w_sc"] = u(ks[8], (nf, ni, 1), ni)
        p["b_sc"] = u(ks[9], (1, nf), ni)
    return p


def _ref_conv1d_reflect(x, w, b):
    L = x.shape[-1]
    xp = jnp.concatenate([x[:, :, 1:2], x, x[:, :, L - 2:L - 1]], axis=-1)
    y = sum(jnp.einsum("oi,nil->nol", w[:, :, k], xp[:, :, k:k + L])
            for k in range(3))
    return y + b[0][None, :, None]


def _ref_bn(x, g, b):
    m = x.mean(axis=(0, 2), keepdims=True)
    v = ((x - m) ** 2).mean(axis=(0, 2), keepdims=True)
    return (x - m) / jnp.sqrt(v + EPS) * g[0][None, :, None] + b[0][None, :, None]


def _ref_lrelu(x):
    return jnp.where(x > 0, x, NEG_SLOPE * x)


def reference(x, p, ni, nf):
    h = _ref_lrelu(_ref_bn(_ref_conv1d_reflect(x, p["w1"], p["b1"]), p["g1"], p["be1"]))
    h = _ref_lrelu(_ref_bn(_ref_conv1d_reflect(h, p["w2"], p["b2"]), p["g2"], p["be2"]))
    if ni == nf:
        sc = _ref_bn(x, p["g_sc"], p["b_sc_bn"])
    else:
        sc = jnp.einsum("oi,nil->nol", p["w_sc"][:, :, 0], x) + p["b_sc"][0][None, :, None]
    return _ref_lrelu(h + sc)


# --------------------------- test ----------------------------------------------

if __name__ == "__main__":
    key = jax.random.PRNGKey(0)

    # case 1: ni != nf (1x1-conv shortcut)
    N, ni, nf, L = 2, 4, 8, 16
    kx, kp, key = jax.random.split(key, 3)
    x = jax.random.normal(kx, (N, ni, L), jnp.float32)
    params = init_params(kp, ni, nf)
    out = jax.block_until_ready(res_block_two_conv(x, params))
    ref = reference(x, params, ni, nf)
    assert out.shape == (N, nf, L)
    assert jnp.allclose(out, ref, rtol=1e-4, atol=1e-4), "mismatch vs JAX reference (ni!=nf)"

    # case 2: ni == nf (BatchNorm shortcut)
    N2, c, L2 = 2, 8, 16
    kx2, kp2 = jax.random.split(key)
    x2 = jax.random.normal(kx2, (N2, c, L2), jnp.float32)
    params2 = init_params(kp2, c, c)
    out2 = jax.block_until_ready(res_block_two_conv(x2, params2))
    ref2 = reference(x2, params2, c, c)
    assert out2.shape == (N2, c, L2)
    assert jnp.allclose(out2, ref2, rtol=1e-4, atol=1e-4), "mismatch vs JAX reference (ni==nf)"

    print("KERNEL_OK")
</pallas_src>

<mosaic_0001>
module attributes {stable_mosaic.version = 11 : i64} {
  func.func @kernel(%arg0: memref<8x128xf32, #tpu.memory_space<vmem>>, %arg1: memref<3x128xf32, #tpu.memory_space<vmem>>, %arg2: memref<3x8x8xf32, #tpu.memory_space<vmem>>, %arg3: memref<3x8x8xf32, #tpu.memory_space<vmem>>, %arg4: memref<8x8xf32, #tpu.memory_space<vmem>>, %arg5: memref<8x6xf32, #tpu.memory_space<vmem>>, %arg6: memref<8x128xf32, #tpu.memory_space<vmem>>) attributes {dimension_semantics = [], scalar_prefetch = 0 : i64, scratch_operands = 0 : i64, tpu.core_type = #tpu.core_type<tc>} {
    %c0 = arith.constant 0 : index
    %c0_0 = arith.constant 0 : index
    %0 = vector.load %arg0[%c0, %c0_0] : memref<8x128xf32, #tpu.memory_space<vmem>>, vector<8x128xf32>
    %c0_1 = arith.constant 0 : index
    %c0_2 = arith.constant 0 : index
    %1 = vector.load %arg1[%c0_1, %c0_2] : memref<3x128xf32, #tpu.memory_space<vmem>>, vector<1x128xf32>
    %cst = arith.constant 0.000000e+00 : f32
    %2 = vector.broadcast %cst : f32 to vector<1x128xf32>
    %3 = arith.cmpf ogt, %1, %2 : vector<1x128xf32>
    %c1 = arith.constant 1 : index
    %c0_3 = arith.constant 0 : index
    %4 = vector.load %arg1[%c1, %c0_3] : memref<3x128xf32, #tpu.memory_space<vmem>>, vector<1x128xf32>
    %cst_4 = arith.constant 0.000000e+00 : f32
    %5 = vector.broadcast %cst_4 : f32 to vector<1x128xf32>
    %6 = arith.cmpf ogt, %4, %5 : vector<1x128xf32>
    %c2 = arith.constant 2 : index
    %c0_5 = arith.constant 0 : index
    %7 = vector.load %arg1[%c2, %c0_5] : memref<3x128xf32, #tpu.memory_space<vmem>>, vector<1x128xf32>
    %c0_6 = arith.constant 0 : index
    %c0_7 = arith.constant 0 : index
    %8 = vector.load %arg5[%c0_6, %c0_7] : memref<8x6xf32, #tpu.memory_space<vmem>>, vector<8x1xf32>
    %c0_8 = arith.constant 0 : index
    %c1_9 = arith.constant 1 : index
    %9 = vector.load %arg5[%c0_8, %c1_9] : memref<8x6xf32, #tpu.memory_space<vmem>>, vector<8x1xf32>
    %c0_10 = arith.constant 0 : index
    %c2_11 = arith.constant 2 : index
    %10 = vector.load %arg5[%c0_10, %c2_11] : memref<8x6xf32, #tpu.memory_space<vmem>>, vector<8x1xf32>
    %c0_12 = arith.constant 0 : index
    %c3 = arith.constant 3 : index
    %11 = vector.load %arg5[%c0_12, %c3] : memref<8x6xf32, #tpu.memory_space<vmem>>, vector<8x1xf32>
    %c1_i32 = arith.constant 1 : i32
    %12 = tpu.dynamic_rotate %0 by %c1_i32 dim 1 : vector<8x128xf32>, i32 -> vector<8x128xf32>
    %c127_i32 = arith.constant 127 : i32
    %13 = tpu.dynamic_rotate %0 by %c127_i32 dim 1 : vector<8x128xf32>, i32 -> vector<8x128xf32>
    %14 = vector.shape_cast %3 : vector<1x128xi1> to vector<1x128xi1>
    %15 = vector.broadcast %14 : vector<1x128xi1> to vector<8x128xi1>
    %16 = arith.select %15, %13, %12 : vector<8x128xi1>, vector<8x128xf32>
    %17 = vector.shape_cast %6 : vector<1x128xi1> to vector<1x128xi1>
    %18 = vector.broadcast %17 : vector<1x128xi1> to vector<8x128xi1>
    %19 = arith.select %18, %12, %13 : vector<8x128xi1>, vector<8x128xf32>
    %c1_13 = arith.constant 1 : index
    %c0_14 = arith.constant 0 : index
    %c0_15 = arith.constant 0 : index
    %20 = vector.load %arg2[%c1_13, %c0_14, %c0_15] : memref<3x8x8xf32, #tpu.memory_space<vmem>>, vector<1x8x8xf32>
    %21 = vector.shape_cast %20 : vector<1x8x8xf32> to vector<8x8xf32>
    %cst_16 = arith.constant dense<0.000000e+00> : vector<8x128xf32>
    %22 = tpu.matmul %21, %0, %cst_16 {dimension_numbers = #tpu.dot_dimension_numbers<[1], [0], [0], [1], [0, 0, 1, 1], [], []>} : vector<8x8xf32>, vector<8x128xf32>, vector<8x128xf32> -> vector<8x128xf32>
    %c0_17 = arith.constant 0 : index
    %c0_18 = arith.constant 0 : index
    %c0_19 = arith.constant 0 : index
    %23 = vector.load %arg2[%c0_17, %c0_18, %c0_19] : memref<3x8x8xf32, #tpu.memory_space<vmem>>, vector<1x8x8xf32>
    %24 = vector.shape_cast %23 : vector<1x8x8xf32> to vector<8x8xf32>
    %cst_20 = arith.constant dense<0.000000e+00> : vector<8x128xf32>
    %25 = tpu.matmul %24, %16, %cst_20 {dimension_numbers = #tpu.dot_dimension_numbers<[1], [0], [0], [1], [0, 0, 1, 1], [], []>} : vector<8x8xf32>, vector<8x128xf32>, vector<8x128xf32> -> vector<8x128xf32>
    %26 = arith.addf %22, %25 : vector<8x128xf32>
    %c2_21 = arith.constant 2 : index
    %c0_22 = arith.constant 0 : index
    %c0_23 = arith.constant 0 : index
    %27 = vector.load %arg2[%c2_21, %c0_22, %c0_23] : memref<3x8x8xf32, #tpu.memory_space<vmem>>, vector<1x8x8xf32>
    %28 = vector.shape_cast %27 : vector<1x8x8xf32> to vector<8x8xf32>
    %cst_24 = arith.constant dense<0.000000e+00> : vector<8x128xf32>
    %29 = tpu.matmul %28, %19, %cst_24 {dimension_numbers = #tpu.dot_dimension_numbers<[1], [0], [0], [1], [0, 0, 1, 1], [], []>} : vector<8x8xf32>, vector<8x128xf32>, vector<8x128xf32> -> vector<8x128xf32>
    %30 = arith.addf %26, %29 : vector<8x128xf32>
    %31 = vector.broadcast %7 : vector<1x128xf32> to vector<8x128xf32>
    %32 = arith.mulf %30, %31 : vector<8x128xf32>
    %cst_25 = arith.constant dense<0.000000e+00> : vector<8xf32>
    %33 = vector.multi_reduction <add>, %32, %cst_25 [1] : vector<8x128xf32> to vector<8xf32>
    %34 = vector.shape_cast %33 : vector<8xf32> to vector<8x1xf32>
    %cst_26 = arith.constant 3.125000e-02 : f32
    %35 = vector.broadcast %cst_26 : f32 to vector<8x1xf32>
    %36 = arith.mulf %34, %35 : vector<8x1xf32>
    %37 = arith.mulf %32, %32 : vector<8x128xf32>
    %cst_27 = arith.constant dense<0.000000e+00> : vector<8xf32>
    %38 = vector.multi_reduction <add>, %37, %cst_27 [1] : vector<8x128xf32> to vector<8xf32>
    %39 = vector.shape_cast %38 : vector<8xf32> to vector<8x1xf32>
    %cst_28 = arith.constant 3.125000e-02 : f32
    %40 = vector.broadcast %cst_28 : f32 to vector<8x1xf32>
    %41 = arith.mulf %39, %40 : vector<8x1xf32>
    %42 = arith.mulf %36, %36 : vector<8x1xf32>
    %43 = arith.subf %41, %42 : vector<8x1xf32>
    %cst_29 = arith.constant 0.000000e+00 : f32
    %44 = vector.broadcast %cst_29 : f32 to vector<8x1xf32>
    %45 = arith.maximumf %43, %44 : vector<8x1xf32>
    %cst_30 = arith.constant 9.99999974E-6 : f32
    %46 = vector.broadcast %cst_30 : f32 to vector<8x1xf32>
    %47 = arith.addf %45, %46 : vector<8x1xf32>
    %48 = math.rsqrt %47 : vector<8x1xf32>
    %49 = arith.mulf %8, %48 : vector<8x1xf32>
    %50 = vector.broadcast %49 : vector<8x1xf32> to vector<8x128xf32>
    %51 = arith.mulf %32, %50 : vector<8x128xf32>
    %52 = arith.mulf %49, %36 : vector<8x1xf32>
    %53 = arith.subf %9, %52 : vector<8x1xf32>
    %54 = vector.broadcast %53 : vector<8x1xf32> to vector<8x128xf32>
    %55 = arith.addf %51, %54 : vector<8x128xf32>
    %cst_31 = arith.constant 0.00999999977 : f32
    %56 = vector.broadcast %cst_31 : f32 to vector<8x128xf32>
    %57 = arith.mulf %56, %55 : vector<8x128xf32>
    %58 = arith.maximumf %55, %57 : vector<8x128xf32>
    %c1_i32_32 = arith.constant 1 : i32
    %59 = tpu.dynamic_rotate %58 by %c1_i32_32 dim 1 : vector<8x128xf32>, i32 -> vector<8x128xf32>
    %c127_i32_33 = arith.constant 127 : i32
    %60 = tpu.dynamic_rotate %58 by %c127_i32_33 dim 1 : vector<8x128xf32>, i32 -> vector<8x128xf32>
    %61 = vector.shape_cast %3 : vector<1x128xi1> to vector<1x128xi1>
    %62 = vector.broadcast %61 : vector<1x128xi1> to vector<8x128xi1>
    %63 = arith.select %62, %60, %59 : vector<8x128xi1>, vector<8x128xf32>
    %64 = vector.shape_cast %6 : vector<1x128xi1> to vector<1x128xi1>
    %65 = vector.broadcast %64 : vector<1x128xi1> to vector<8x128xi1>
    %66 = arith.select %65, %59, %60 : vector<8x128xi1>, vector<8x128xf32>
    %c1_34 = arith.constant 1 : index
    %c0_35 = arith.constant 0 : index
    %c0_36 = arith.constant 0 : index
    %67 = vector.load %arg3[%c1_34, %c0_35, %c0_36] : memref<3x8x8xf32, #tpu.memory_space<vmem>>, vector<1x8x8xf32>
    %68 = vector.shape_cast %67 : vector<1x8x8xf32> to vector<8x8xf32>
    %cst_37 = arith.constant dense<0.000000e+00> : vector<8x128xf32>
    %69 = tpu.matmul %68, %58, %cst_37 {dimension_numbers = #tpu.dot_dimension_numbers<[1], [0], [0], [1], [0, 0, 1, 1], [], []>} : vector<8x8xf32>, vector<8x128xf32>, vector<8x128xf32> -> vector<8x128xf32>
    %c0_38 = arith.constant 0 : index
    %c0_39 = arith.constant 0 : index
    %c0_40 = arith.constant 0 : index
    %70 = vector.load %arg3[%c0_38, %c0_39, %c0_40] : memref<3x8x8xf32, #tpu.memory_space<vmem>>, vector<1x8x8xf32>
    %71 = vector.shape_cast %70 : vector<1x8x8xf32> to vector<8x8xf32>
    %cst_41 = arith.constant dense<0.000000e+00> : vector<8x128xf32>
    %72 = tpu.matmul %71, %63, %cst_41 {dimension_numbers = #tpu.dot_dimension_numbers<[1], [0], [0], [1], [0, 0, 1, 1], [], []>} : vector<8x8xf32>, vector<8x128xf32>, vector<8x128xf32> -> vector<8x128xf32>
    %73 = arith.addf %69, %72 : vector<8x128xf32>
    %c2_42 = arith.constant 2 : index
    %c0_43 = arith.constant 0 : index
    %c0_44 = arith.constant 0 : index
    %74 = vector.load %arg3[%c2_42, %c0_43, %c0_44] : memref<3x8x8xf32, #tpu.memory_space<vmem>>, vector<1x8x8xf32>
    %75 = vector.shape_cast %74 : vector<1x8x8xf32> to vector<8x8xf32>
    %cst_45 = arith.constant dense<0.000000e+00> : vector<8x128xf32>
    %76 = tpu.matmul %75, %66, %cst_45 {dimension_numbers = #tpu.dot_dimension_numbers<[1], [0], [0], [1], [0, 0, 1, 1], [], []>} : vector<8x8xf32>, vector<8x128xf32>, vector<8x128xf32> -> vector<8x128xf32>
    %77 = arith.addf %73, %76 : vector<8x128xf32>
    %78 = vector.broadcast %7 : vector<1x128xf32> to vector<8x128xf32>
    %79 = arith.mulf %77, %78 : vector<8x128xf32>
    %cst_46 = arith.constant dense<0.000000e+00> : vector<8xf32>
    %80 = vector.multi_reduction <add>, %79, %cst_46 [1] : vector<8x128xf32> to vector<8xf32>
    %81 = vector.shape_cast %80 : vector<8xf32> to vector<8x1xf32>
    %cst_47 = arith.constant 3.125000e-02 : f32
    %82 = vector.broadcast %cst_47 : f32 to vector<8x1xf32>
    %83 = arith.mulf %81, %82 : vector<8x1xf32>
    %84 = arith.mulf %79, %79 : vector<8x128xf32>
    %cst_48 = arith.constant dense<0.000000e+00> : vector<8xf32>
    %85 = vector.multi_reduction <add>, %84, %cst_48 [1] : vector<8x128xf32> to vector<8xf32>
    %86 = vector.shape_cast %85 : vector<8xf32> to vector<8x1xf32>
    %cst_49 = arith.constant 3.125000e-02 : f32
    %87 = vector.broadcast %cst_49 : f32 to vector<8x1xf32>
    %88 = arith.mulf %86, %87 : vector<8x1xf32>
    %89 = arith.mulf %83, %83 : vector<8x1xf32>
    %90 = arith.subf %88, %89 : vector<8x1xf32>
    %cst_50 = arith.constant 0.000000e+00 : f32
    %91 = vector.broadcast %cst_50 : f32 to vector<8x1xf32>
    %92 = arith.maximumf %90, %91 : vector<8x1xf32>
    %cst_51 = arith.constant 9.99999974E-6 : f32
    %93 = vector.broadcast %cst_51 : f32 to vector<8x1xf32>
    %94 = arith.addf %92, %93 : vector<8x1xf32>
    %95 = math.rsqrt %94 : vector<8x1xf32>
    %96 = arith.mulf %10, %95 : vector<8x1xf32>
    %97 = vector.broadcast %96 : vector<8x1xf32> to vector<8x128xf32>
    %98 = arith.mulf %79, %97 : vector<8x128xf32>
    %99 = arith.mulf %96, %83 : vector<8x1xf32>
    %100 = arith.subf %11, %99 : vector<8x1xf32>
    %101 = vector.broadcast %100 : vector<8x1xf32> to vector<8x128xf32>
    %102 = arith.addf %98, %101 : vector<8x128xf32>
    %cst_52 = arith.constant 0.00999999977 : f32
    %103 = vector.broadcast %cst_52 : f32 to vector<8x128xf32>
    %104 = arith.mulf %103, %102 : vector<8x128xf32>
    %105 = arith.maximumf %102, %104 : vector<8x128xf32>
    %c0_53 = arith.constant 0 : index
    %c0_54 = arith.constant 0 : index
    %106 = vector.load %arg4[%c0_53, %c0_54] : memref<8x8xf32, #tpu.memory_space<vmem>>, vector<8x8xf32>
    %cst_55 = arith.constant dense<0.000000e+00> : vector<8x128xf32>
    %107 = tpu.matmul %106, %0, %cst_55 {dimension_numbers = #tpu.dot_dimension_numbers<[1], [0], [0], [1], [0, 0, 1, 1], [], []>} : vector<8x8xf32>, vector<8x128xf32>, vector<8x128xf32> -> vector<8x128xf32>
    %c0_56 = arith.constant 0 : index
    %c5 = arith.constant 5 : index
    %108 = vector.load %arg5[%c0_56, %c5] : memref<8x6xf32, #tpu.memory_space<vmem>>, vector<8x1xf32>
    %109 = vector.broadcast %108 : vector<8x1xf32> to vector<8x128xf32>
    %110 = arith.addf %107, %109 : vector<8x128xf32>
    %111 = arith.addf %105, %110 : vector<8x128xf32>
    %cst_57 = arith.constant 0.00999999977 : f32
    %112 = vector.broadcast %cst_57 : f32 to vector<8x128xf32>
    %113 = arith.mulf %112, %111 : vector<8x128xf32>
    %114 = arith.maximumf %111, %113 : vector<8x128xf32>
    %c0_58 = arith.constant 0 : index
    %c0_59 = arith.constant 0 : index
    %115 = vector.load %arg6[%c0_58, %c0_59] : memref<8x128xf32, #tpu.memory_space<vmem>>, vector<8x128xf32>
    tpu.vector_store %arg6[%c0_58, %c0_59], %114 {strides = array<i32>} : memref<8x128xf32, #tpu.memory_space<vmem>>, vector<8x128xf32>,
    return
  }
}

</mosaic_0001>

<llo_original>
// kernel: tpu_custom_call.1
$region0: #{tpu_custom_call.1}
  #allocation0 [shape = 'u32[]', space=smem, size = 0x4, offset = 0x4, fixed_abs, tag = 'smem constant byte address 0x4 - core index']
  #allocation1 [shape = 'u32[72,128]{1,0:T(1,128)}', space=vmem, size = 0x9000, scoped, tag = 'internal scratch']
  %s0 = inlined_call_operand.hbm [shape: f32[8,128], index: 0, kind: input, shape index: {}]
  %s1 = inlined_call_operand.hbm [shape: f32[3,128], index: 1, kind: input, shape index: {}]
  %s2 = inlined_call_operand.hbm [shape: f32[3,8,8], index: 2, kind: input, shape index: {}]
  %s3 = inlined_call_operand.hbm [shape: f32[3,8,8], index: 3, kind: input, shape index: {}]
  %s4 = inlined_call_operand.hbm [shape: f32[8,8], index: 4, kind: input, shape index: {}]
  %s5 = inlined_call_operand.hbm [shape: f32[8,6], index: 5, kind: input, shape index: {}]
  %s6 = inlined_call_operand.hbm [shape: f32[8,128], index: 6, kind: output, shape index: {}]
  %s7 = sld [smem:[#allocation0]]
  $region58: #{tpu_custom_call.1} parent=0
    _
  %s9 = ssub.s32 1, %s7
  %s10 = scalar_select 0, %s9, %s7
  $region1: #{tpu_custom_call.1} parent=0
    #allocation2 [shape = 'u8[4096]{0}', space=vmem, size = 0x1000, scoped, tag = 'input window, operand 0, single buffered']
    #allocation3 [shape = 's32[1]{0}', space=sflag, size = 0x4, scoped, tag = 'scoped memory for tpu_custom_call.1']
    #allocation4 [shape = 's32[1]{0}', space=sflag, size = 0x4, scoped, tag = 'scoped memory for tpu_custom_call.1']
    #allocation5 [shape = 'u8[2048]{0}', space=vmem, size = 0x800, scoped, tag = 'input window, operand 1, single buffered']
    #allocation6 [shape = 's32[1]{0}', space=sflag, size = 0x4, scoped, tag = 'scoped memory for tpu_custom_call.1']
    #allocation7 [shape = 'u8[12288]{0}', space=vmem, size = 0x3000, scoped, tag = 'input window, operand 2, single buffered']
    #allocation8 [shape = 'u8[12288]{0}', space=vmem, size = 0x3000, scoped, tag = 'input window, operand 3, single buffered']
    #allocation9 [shape = 's32[1]{0}', space=sflag, size = 0x4, scoped, tag = 'scoped memory for tpu_custom_call.1']
    #allocation10 [shape = 'u8[4096]{0}', space=vmem, size = 0x1000, scoped, tag = 'input window, operand 4, single buffered']
    #allocation11 [shape = 'u8[4096]{0}', space=vmem, size = 0x1000, scoped, tag = 'input window, operand 5, single buffered']
    #allocation12 [shape = 's32[1]{0}', space=sflag, size = 0x4, scoped, tag = 'scoped memory for tpu_custom_call.1']
    #allocation13 [shape = 'u8[4096]{0}', space=vmem, size = 0x1000, scoped, tag = 'output window, operand 0, single buffered']
    %11 = vsyncpa [#allocation3], 0
    %12 = vsyncpa [#allocation6], 0
    %13 = vsyncpa [#allocation9], 0
    %14 = vsyncpa [#allocation12], 0
    %15 = vsyncpa [#allocation4], 0
    // Predicated region
    $region2: #{tpu_custom_call.1} parent=1 // pred_check
      _
    $region3: #{tpu_custom_call.1} parent=1 // pred_check_branch
      %17 = sbr.rel (0) target = $region5
    $region4: #{tpu_custom_call.1} parent=1 // pred_region
      %19 = vsyncadd [#allocation3], 0
      %s21 = sshll.u32 %s0, 4
      %s22 = int_to_ptr.hbm [resolvable:$true] %s21
      %s23 = sshll.u32 [#allocation2], 4
      %s24 = int_to_ptr.vmem [resolvable:$true] %s23
      %26 = dma.hbm_to_vmem [thread:$0]  %s22, 128, %s24, [#allocation3]
    $region5: #{tpu_custom_call.1} parent=1 // pred_fallthru
      _
    // Predicated region
    $region6: #{tpu_custom_call.1} parent=1 // pred_check
      _
    $region7: #{tpu_custom_call.1} parent=1 // pred_check_branch
      %28 = sbr.rel (0) target = $region9
    $region8: #{tpu_custom_call.1} parent=1 // pred_region
      %30 = vsyncadd [#allocation6], 0
      %s32 = sshll.u32 %s1, 4
      %s33 = int_to_ptr.hbm [resolvable:$true] %s32
      %s34 = sshll.u32 [#allocation5], 4
      %s35 = int_to_ptr.vmem [resolvable:$true] %s34
      %37 = dma.hbm_to_vmem [thread:$0]  %s33, 64, %s35, [#allocation6]
    $region9: #{tpu_custom_call.1} parent=1 // pred_fallthru
      _
    // Predicated region
    $region10: #{tpu_custom_call.1} parent=1 // pred_check
      _
    $region11: #{tpu_custom_call.1} parent=1 // pred_check_branch
      %39 = sbr.rel (0) target = $region13
    $region12: #{tpu_custom_call.1} parent=1 // pred_region
      %41 = vsyncadd [#allocation6], 0
      %s42 = sshll.u32 %s2, 4
      %s43 = int_to_ptr.hbm [resolvable:$true] %s42
      %s44 = sshll.u32 [#allocation7], 4
      %s45 = int_to_ptr.vmem [resolvable:$true] %s44
      %50 = dma.hbm_to_vmem [thread:$0]  %s43, 384, %s45, [#allocation6], 128, 128, 8
    $region13: #{tpu_custom_call.1} parent=1 // pred_fallthru
      _
    // Predicated region
    $region14: #{tpu_custom_call.1} parent=1 // pred_check
      _
    $region15: #{tpu_custom_call.1} parent=1 // pred_check_branch
      %52 = sbr.rel (0) target = $region17
    $region16: #{tpu_custom_call.1} parent=1 // pred_region
      %54 = vsyncadd [#allocation9], 0
      %s55 = sshll.u32 %s3, 4
      %s56 = int_to_ptr.hbm [resolvable:$true] %s55
      %s57 = sshll.u32 [#allocation8], 4
      %s58 = int_to_ptr.vmem [resolvable:$true] %s57
      %63 = dma.hbm_to_vmem [thread:$0]  %s56, 384, %s58, [#allocation9], 128, 128, 8
    $region17: #{tpu_custom_call.1} parent=1 // pred_fallthru
      _
    // Predicated region
    $region18: #{tpu_custom_call.1} parent=1 // pred_check
      _
    $region19: #{tpu_custom_call.1} parent=1 // pred_check_branch
      %65 = sbr.rel (0) target = $region21
    $region20: #{tpu_custom_call.1} parent=1 // pred_region
      %67 = vsyncadd [#allocation9], 0
      %s69 = sshll.u32 %s4, 4
      %s70 = int_to_ptr.hbm [resolvable:$true] %s69
      %s71 = sshll.u32 [#allocation10], 4
      %s72 = int_to_ptr.vmem [resolvable:$true] %s71
      %74 = dma.hbm_to_vmem [thread:$0]  %s70, 128, %s72, [#allocation9]
    $region21: #{tpu_custom_call.1} parent=1 // pred_fallthru
      _
    // Predicated region
    $region22: #{tpu_custom_call.1} parent=1 // pred_check
      _
    $region23: #{tpu_custom_call.1} parent=1 // pred_check_branch
      %76 = sbr.rel (0) target = $region25
    $region24: #{tpu_custom_call.1} parent=1 // pred_region
      %78 = vsyncadd [#allocation12], 0
      %s80 = sshll.u32 %s5, 4
      %s81 = int_to_ptr.hbm [resolvable:$true] %s80
      %s82 = sshll.u32 [#allocation11], 4
      %s83 = int_to_ptr.vmem [resolvable:$true] %s82
      %85 = dma.hbm_to_vmem [thread:$0]  %s81, 128, %s83, [#allocation12]
    $region25: #{tpu_custom_call.1} parent=1 // pred_fallthru
      _
    // Predicated region
    $region26: #{tpu_custom_call.1} parent=1 // pred_check
      _
    $region27: #{tpu_custom_call.1} parent=1 // pred_check_branch
      %87 = sbr.rel (0) target = $region29
    $region28: #{tpu_custom_call.1} parent=1 // pred_region
      %89 = dma.done [#allocation3], 128
    $region29: #{tpu_custom_call.1} parent=1 // pred_fallthru
      _
    // Predicated region
    $region30: #{tpu_custom_call.1} parent=1 // pred_check
      _
    $region31: #{tpu_custom_call.1} parent=1 // pred_check_branch
      %91 = sbr.rel (0) target = $region33
    $region32: #{tpu_custom_call.1} parent=1 // pred_region
      %93 = dma.done [#allocation6], 64
    $region33: #{tpu_custom_call.1} parent=1 // pred_fallthru
      _
    // Predicated region
    $region34: #{tpu_custom_call.1} parent=1 // pred_check
      _
    $region35: #{tpu_custom_call.1} parent=1 // pred_check_branch
      %95 = sbr.rel (0) target = $region37
    $region36: #{tpu_custom_call.1} parent=1 // pred_region
      %97 = dma.done [#allocation6], 384
    $region37: #{tpu_custom_call.1} parent=1 // pred_fallthru
      _
    // Predicated region
    $region38: #{tpu_custom_call.1} parent=1 // pred_check
      _
    $region39: #{tpu_custom_call.1} parent=1 // pred_check_branch
      %99 = sbr.rel (0) target = $region41
    $region40: #{tpu_custom_call.1} parent=1 // pred_region
      %101 = dma.done [#allocation9], 384
    $region41: #{tpu_custom_call.1} parent=1 // pred_fallthru
      _
    // Predicated region
    $region42: #{tpu_custom_call.1} parent=1 // pred_check
      _
    $region43: #{tpu_custom_call.1} parent=1 // pred_check_branch
      %103 = sbr.rel (0) target = $region45
    $region44: #{tpu_custom_call.1} parent=1 // pred_region
      %105 = dma.done [#allocation9], 128
    $region45: #{tpu_custom_call.1} parent=1 // pred_fallthru
      _
    // Predicated region
    $region46: #{tpu_custom_call.1} parent=1 // pred_check
      _
    $region47: #{tpu_custom_call.1} parent=1 // pred_check_branch
      %107 = sbr.rel (0) target = $region49
    $region48: #{tpu_custom_call.1} parent=1 // pred_region
      %109 = dma.done [#allocation12], 128
    $region49: #{tpu_custom_call.1} parent=1 // pred_fallthru
      _
    %v110 = vld [vmem:[#allocation2] sm:$0xff]
    %v111 = vld [vmem:[#allocation5] sm:$0x1]
    %vm112 = vcmp.gt.f32.partialorder %v111, 0.0
    %v113 = vld [vmem:[#allocation5 + $0x1] sm:$0x1]
    %vm114 = vcmp.gt.f32.partialorder %v113, 0.0
    %v115 = vld [vmem:[#allocation5 + $0x2] sm:$0x1]
    %v116 = vld [vmem:[#allocation11] sm:$0xff]
    %117 = vrot.lane.b32.xlu0 %v110, 1
    %v118 = vpop.permute.xlu0 %117
    %119 = vrot.lane.b32.xlu0 %v110, 127
    %v120 = vpop.permute.xlu0 %119
    %v121 = vsel %vm112, 1, 0
    %v122 = vperm.slane %v121, 0
    %vm123 = vcmp.eq.s32.totalorder %v122, 1
    %v124 = vsel %vm123, %v120, %v118
    %v125 = vsel %vm114, 1, 0
    %v126 = vperm.slane %v125, 0
    %vm127 = vcmp.eq.s32.totalorder %v126, 1
    %v128 = vsel %vm127, %v118, %v120
    %s129 = scalar_lea.vmem [#allocation7], 8
    %v130 = vld [vmem:[%s129] sm:$0xff]
    %v131 = vld [vmem:[#allocation7] sm:$0xff]
    %vm132 = vcmask 64512
    %v134 = vsel %vm132, %v131, 0
    %136 = vmatpush.msra.mxu0 0.0
    %137 = vmatpush.msra.mxu0 0.0
    %138 = vmatpush.msra.mxu0 0.0
    %139 = vmatpush.msra.mxu0 0.0
    %140 = vmatpush.msra.mxu0 0.0
    %141 = vmatpush.msra.mxu0 0.0
    %142 = vmatpush.msra.mxu0 0.0
    %143 = vmatpush.msra.mxu0 0.0
    %144 = vmatpush.msra.mxu0 0.0
    %145 = vmatpush.msra.mxu0 0.0
    %146 = vmatpush.msra.mxu0 0.0
    %147 = vmatpush.msra.mxu0 0.0
    %148 = vmatpush.msra.mxu0 0.0
    %149 = vmatpush.msra.mxu0 0.0
    %150 = vmatpush.msra.mxu0 0.0
    %151 = vmatpush.msra.mxu0 %v124
    %152 = vmatmul.f32.gmra.mxu0 %v134
    %v153 = vpop.f32.mrf.mxu0
    %v154 = vadd.f32 0.0, %v153
    %155 = vdwg.mxu0
    %v157 = vsel %vm132, %v130, 0
    %159 = vmatpush.msra.mxu0 0.0
    %160 = vmatpush.msra.mxu0 0.0
    %161 = vmatpush.msra.mxu0 0.0
    %162 = vmatpush.msra.mxu0 0.0
    %163 = vmatpush.msra.mxu0 0.0
    %164 = vmatpush.msra.mxu0 0.0
    %165 = vmatpush.msra.mxu0 0.0
    %166 = vmatpush.msra.mxu0 0.0
    %167 = vmatpush.msra.mxu0 0.0
    %168 = vmatpush.msra.mxu0 0.0
    %169 = vmatpush.msra.mxu0 0.0
    %170 = vmatpush.msra.mxu0 0.0
    %171 = vmatpush.msra.mxu0 0.0
    %172 = vmatpush.msra.mxu0 0.0
    %173 = vmatpush.msra.mxu0 0.0
    %174 = vmatpush.msra.mxu0 %v110
    %175 = vmatmul.f32.gmra.mxu0 %v157
    %v176 = vpop.f32.mrf.mxu0
    %v177 = vadd.f32 %v154, %v176
    %178 = vdwg.mxu0
    %s179 = scalar_lea.vmem [#allocation7], 16
    %v180 = vld [vmem:[%s179] sm:$0xff]
    %v182 = vsel %vm132, %v180, 0
    %184 = vmatpush.msra.mxu0 0.0
    %185 = vmatpush.msra.mxu0 0.0
    %186 = vmatpush.msra.mxu0 0.0
    %187 = vmatpush.msra.mxu0 0.0
    %188 = vmatpush.msra.mxu0 0.0
    %189 = vmatpush.msra.mxu0 0.0
    %190 = vmatpush.msra.mxu0 0.0
    %191 = vmatpush.msra.mxu0 0.0
    %192 = vmatpush.msra.mxu0 0.0
    %193 = vmatpush.msra.mxu0 0.0
    %194 = vmatpush.msra.mxu0 0.0
    %195 = vmatpush.msra.mxu0 0.0
    %196 = vmatpush.msra.mxu0 0.0
    %197 = vmatpush.msra.mxu0 0.0
    %198 = vmatpush.msra.mxu0 0.0
    %199 = vmatpush.msra.mxu0 %v128
    %200 = vmatmul.f32.gmra.mxu0 %v182
    %v201 = vpop.f32.mrf.mxu0
    %v202 = vadd.f32 0.0, %v201
    %203 = vdwg.mxu0
    %v204 = vadd.f32 %v177, %v202
    %v205 = vperm.slane %v115, 0
    %v206 = vmul.f32 %v204, %v205
    %207 = vadd.xlane.f32.xlu0 %v206
    %v208 = vpop.xlane.xlu0 %207
    %v209 = vmul.f32 %v208, 0.03125
    %v210 = vmul.f32 %v206, %v206
    %211 = vadd.xlane.f32.xlu0 %v210
    %v212 = vpop.xlane.xlu0 %211
    %v213 = vmul.f32 %v212, 0.03125
    %v214 = vmul.f32 %v209, %v209
    %v215 = vsub.f32 %v213, %v214
    %v216 = vmax.f32 %v215, 0.0
    %v217 = vadd.f32 %v216, 1e-05
    %v218 = vrsqrt.pop %v217
    %v219 = vmul.f32 %v218, %v217
    %v220 = vmul.f32 %v219, %v218
    %v221 = vmul.f32 0.5, %v220
    %v222 = vsub.f32 1.5, %v221
    %v223 = vmul.f32 %v218, %v222
    %vm224 = vweird.f32 %v217
    %vm225 = vweird.f32 %v218
    %vm226 = vmor %vm224, %vm225
    %v227 = vsel %vm226, %v218, %v223
    %v228 = vmul.f32 %v116, %v227
    %230 = vset.pattern.permute.xlu0 0
    %231 = vperm.xlu0 %230, %v228
    %v232 = vpop.permute.xlu0 %231
    %v234 = vmul.f32 %v206, %v232
    %v235 = vmul.f32 %v228, %v209
    %237 = vrot.lane.b32.xlu0 %v235, 1
    %v238 = vpop.permute.xlu0 %237
    %v240 = vsub.f32 %v116, %v238
    %242 = vset.pattern.permute.xlu0 1
    %243 = vperm.xlu0 %242, %v240
    %v244 = vpop.permute.xlu0 %243
    %v246 = vadd.f32 %v234, %v244
    %v247 = vmul.f32 %v246, 0.01
    %v248 = vmax.f32 %v246, %v247
    %249 = vrot.lane.b32.xlu0 %v248, 1
    %v250 = vpop.permute.xlu0 %249
    %251 = vrot.lane.b32.xlu0 %v248, 127
    %v252 = vpop.permute.xlu0 %251
    %v253 = vsel %vm123, %v252, %v250
    %v254 = vsel %vm127, %v250, %v252
    %s255 = scalar_lea.vmem [#allocation8], 8
    %v256 = vld [vmem:[%s255] sm:$0xff]
    %v257 = vld [vmem:[#allocation8] sm:$0xff]
    %v259 = vsel %vm132, %v257, 0
    %261 = vmatpush.msra.mxu0 0.0
    %262 = vmatpush.msra.mxu0 0.0
    %263 = vmatpush.msra.mxu0 0.0
    %264 = vmatpush.msra.mxu0 0.0
    %265 = vmatpush.msra.mxu0 0.0
    %266 = vmatpush.msra.mxu0 0.0
    %267 = vmatpush.msra.mxu0 0.0
    %268 = vmatpush.msra.mxu0 0.0
    %269 = vmatpush.msra.mxu0 0.0
    %270 = vmatpush.msra.mxu0 0.0
    %271 = vmatpush.msra.mxu0 0.0
    %272 = vmatpush.msra.mxu0 0.0
    %273 = vmatpush.msra.mxu0 0.0
    %274 = vmatpush.msra.mxu0 0.0
    %275 = vmatpush.msra.mxu0 0.0
    %276 = vmatpush.msra.mxu0 %v253
    %277 = vmatmul.f32.gmra.mxu0 %v259
    %v278 = vpop.f32.mrf.mxu0
    %v279 = vadd.f32 0.0, %v278
    %280 = vdwg.mxu0
    %v282 = vsel %vm132, %v256, 0
    %284 = vmatpush.msra.mxu0 0.0
    %285 = vmatpush.msra.mxu0 0.0
    %286 = vmatpush.msra.mxu0 0.0
    %287 = vmatpush.msra.mxu0 0.0
    %288 = vmatpush.msra.mxu0 0.0
    %289 = vmatpush.msra.mxu0 0.0
    %290 = vmatpush.msra.mxu0 0.0
    %291 = vmatpush.msra.mxu0 0.0
    %292 = vmatpush.msra.mxu0 0.0
    %293 = vmatpush.msra.mxu0 0.0
    %294 = vmatpush.msra.mxu0 0.0
    %295 = vmatpush.msra.mxu0 0.0
    %296 = vmatpush.msra.mxu0 0.0
    %297 = vmatpush.msra.mxu0 0.0
    %298 = vmatpush.msra.mxu0 0.0
    %299 = vmatpush.msra.mxu0 %v248
    %300 = vmatmul.f32.gmra.mxu0 %v282
    %v301 = vpop.f32.mrf.mxu0
    %v302 = vadd.f32 %v279, %v301
    %303 = vdwg.mxu0
    %s304 = scalar_lea.vmem [#allocation8], 16
    %v305 = vld [vmem:[%s304] sm:$0xff]
    %v307 = vsel %vm132, %v305, 0
    %309 = vmatpush.msra.mxu0 0.0
    %310 = vmatpush.msra.mxu0 0.0
    %311 = vmatpush.msra.mxu0 0.0
    %312 = vmatpush.msra.mxu0 0.0
    %313 = vmatpush.msra.mxu0 0.0
    %314 = vmatpush.msra.mxu0 0.0
    %315 = vmatpush.msra.mxu0 0.0
    %316 = vmatpush.msra.mxu0 0.0
    %317 = vmatpush.msra.mxu0 0.0
    %318 = vmatpush.msra.mxu0 0.0
    %319 = vmatpush.msra.mxu0 0.0
    %320 = vmatpush.msra.mxu0 0.0
    %321 = vmatpush.msra.mxu0 0.0
    %322 = vmatpush.msra.mxu0 0.0
    %323 = vmatpush.msra.mxu0 0.0
    %324 = vmatpush.msra.mxu0 %v254
    %325 = vmatmul.f32.gmra.mxu0 %v307
    %v326 = vpop.f32.mrf.mxu0
    %v327 = vadd.f32 0.0, %v326
    %328 = vdwg.mxu0
    %v329 = vadd.f32 %v302, %v327
    %v330 = vmul.f32 %v329, %v205
    %331 = vadd.xlane.f32.xlu0 %v330
    %v332 = vpop.xlane.xlu0 %331
    %v333 = vmul.f32 %v332, 0.03125
    %v334 = vmul.f32 %v330, %v330
    %335 = vadd.xlane.f32.xlu0 %v334
    %v336 = vpop.xlane.xlu0 %335
    %v337 = vmul.f32 %v336, 0.03125
    %v338 = vmul.f32 %v333, %v333
    %v339 = vsub.f32 %v337, %v338
    %v340 = vmax.f32 %v339, 0.0
    %v341 = vadd.f32 %v340, 1e-05
    %v342 = vrsqrt.pop %v341
    %v343 = vmul.f32 %v342, %v341
    %v344 = vmul.f32 %v343, %v342
    %v345 = vmul.f32 0.5, %v344
    %v346 = vsub.f32 1.5, %v345
    %v347 = vmul.f32 %v342, %v346
    %vm348 = vweird.f32 %v341
    %vm349 = vweird.f32 %v342
    %vm350 = vmor %vm348, %vm349
    %v351 = vsel %vm350, %v342, %v347
    %v352 = vmul.f32 %v116, %v351
    %354 = vset.pattern.permute.xlu0 2
    %355 = vperm.xlu0 %354, %v352
    %v356 = vpop.permute.xlu0 %355
    %v358 = vmul.f32 %v330, %v356
    %v359 = vmul.f32 %v352, %v333
    %361 = vrot.lane.b32.xlu0 %v359, 1
    %v362 = vpop.permute.xlu0 %361
    %v364 = vsub.f32 %v116, %v362
    %366 = vset.pattern.permute.xlu0 3
    %367 = vperm.xlu0 %366, %v364
    %v368 = vpop.permute.xlu0 %367
    %v370 = vadd.f32 %v358, %v368
    %v371 = vmul.f32 %v370, 0.01
    %v372 = vmax.f32 %v370, %v371
    %v373 = vld [vmem:[#allocation10] sm:$0xff]
    %375 = vset.pattern.permute.xlu0 5
    %376 = vperm.xlu0 %375, %v116
    %v377 = vpop.permute.xlu0 %376
    %v380 = vsel %vm132, %v373, 0
    %382 = vmatpush.msra.mxu0 0.0
    %383 = vmatpush.msra.mxu0 0.0
    %384 = vmatpush.msra.mxu0 0.0
    %385 = vmatpush.msra.mxu0 0.0
    %386 = vmatpush.msra.mxu0 0.0
    %387 = vmatpush.msra.mxu0 0.0
    %388 = vmatpush.msra.mxu0 0.0
    %389 = vmatpush.msra.mxu0 0.0
    %390 = vmatpush.msra.mxu0 0.0
    %391 = vmatpush.msra.mxu0 0.0
    %392 = vmatpush.msra.mxu0 0.0
    %393 = vmatpush.msra.mxu0 0.0
    %394 = vmatpush.msra.mxu0 0.0
    %395 = vmatpush.msra.mxu0 0.0
    %396 = vmatpush.msra.mxu0 0.0
    %397 = vmatpush.msra.mxu0 %v110
    %398 = vmatmul.f32.gmra.mxu0 %v380
    %v399 = vpop.f32.mrf.mxu0
    %v400 = vadd.f32 %v377, %v399
    %401 = vdwg.mxu0
    %v402 = vadd.f32 %v372, %v400
    %v403 = vmul.f32 %v402, 0.01
    %v404 = vmax.f32 %v402, %v403
    %405 = vst [vmem:[#allocation13] sm:$0xff] %v404
    // Predicated region
    $region50: #{tpu_custom_call.1} parent=1 // pred_check
      _
    $region51: #{tpu_custom_call.1} parent=1 // pred_check_branch
      %407 = sbr.rel (0) target = $region53
    $region52: #{tpu_custom_call.1} parent=1 // pred_region
      %409 = vsyncadd [#allocation4], 0
      %s411 = sshll.u32 [#allocation13], 4
      %s412 = int_to_ptr.vmem [resolvable:$true] %s411
      %s413 = sshll.u32 %s6, 4
      %s414 = int_to_ptr.hbm [resolvable:$true] %s413
      %416 = dma.vmem_to_hbm [thread:$0]  %s412, 128, %s414, [#allocation4]
    $region53: #{tpu_custom_call.1} parent=1 // pred_fallthru
      _
    // Predicated region
    $region54: #{tpu_custom_call.1} parent=1 // pred_check
      _
    $region55: #{tpu_custom_call.1} parent=1 // pred_check_branch
      %418 = sbr.rel (0) target = $region57
    $region56: #{tpu_custom_call.1} parent=1 // pred_region
      %420 = dma.done [#allocation4], 128
    $region57: #{tpu_custom_call.1} parent=1 // pred_fallthru
      _
    %421 = vsyncpa [#allocation3], 1
    %422 = vsyncpa [#allocation6], 1
    %423 = vsyncpa [#allocation9], 1
    %424 = vsyncpa [#allocation12], 1
    %425 = vsyncpa [#allocation4], 1

</llo_original>
